<compile_context>
chip_gen: v5e
topology: v5e:2x2
jax: 0.10.0
libtpu: 0.0.40
codegen_flags: <defaults>
</compile_context>

<pallas_src>
import jax
import jax.numpy as jnp
from jax.experimental import pallas as pl
from jax.experimental.pallas import tpu as pltpu

LN_EPS = 1e-5  # torch.nn.LayerNorm default


# ----------------------------- kernel ---------------------------------------


def _layernorm_1pass(x, w, b, h_true):
    """Single-pass LayerNorm over the lane dim; divisor is the TRUE hidden size
    so zero-padded lanes do not perturb mean/var."""
    inv_h = 1.0 / float(h_true)
    s = jnp.sum(x, axis=-1, keepdims=True)
    ss = jnp.sum(x * x, axis=-1, keepdims=True)
    mu = s * inv_h
    var = ss * inv_h - mu * mu
    inv = jax.lax.rsqrt(var + LN_EPS)
    return (x - mu) * inv * w + b


def _make_kernel(n_seq, n_img, h_true, out_dtype):
    def kernel(*refs):
        seq_refs = refs[:n_seq]
        img_refs = refs[n_seq:n_seq + n_img]
        (ln_s_w_ref, ln_s_b_ref, ln_i_w_ref, ln_i_b_ref,
         gate_w_ref, out_ref) = refs[n_seq + n_img:]

        # Fused residual adds + upcast to f32 on the VMEM tile (free VPU filler).
        x_s = seq_refs[0][...].astype(jnp.float32)
        for r in seq_refs[1:]:
            x_s = x_s + r[...].astype(jnp.float32)
        x_i = img_refs[0][...].astype(jnp.float32)
        for r in img_refs[1:]:
            x_i = x_i + r[...].astype(jnp.float32)

        seq_att = _layernorm_1pass(x_s, ln_s_w_ref[...].astype(jnp.float32),
                                   ln_s_b_ref[...].astype(jnp.float32), h_true)
        img_att = _layernorm_1pass(x_i, ln_i_w_ref[...].astype(jnp.float32),
                                   ln_i_b_ref[...].astype(jnp.float32), h_true)

        # softmax over a 2-way stack == sigmoid of the logit difference;
        # the Linear bias appears in both logits and cancels exactly.
        d = seq_att - img_att
        logit = jnp.sum(d * gate_w_ref[...].astype(jnp.float32),
                        axis=-1, keepdims=True)          # [TB, 1]
        g0 = jax.nn.sigmoid(logit)                        # attn_gate[0]

        # fusion = (seq_att - img_att) * gate0 + img_att
        out_ref[...] = (d * g0 + img_att).astype(out_dtype)

    return kernel


# ----------------------------- wrapper ---------------------------------------


def _is_static_zero(x):
    return isinstance(x, (int, float)) and x == 0


def _pad_lanes(a, hp):
    h = a.shape[-1]
    return a if h == hp else jnp.pad(a, ((0, 0), (0, hp - h)))


def gated_fusion(ques_w, img_w, params, ques_p=0, img_p=0, ques_q=0, img_q=0,
                 *, block_rows=512):
    """JAX wrapper mirroring GatedFusion.forward (dropout disabled)."""
    seq_parts = [ques_w] + [p for p in (ques_p, ques_q) if not _is_static_zero(p)]
    img_parts = [img_w] + [p for p in (img_p, img_q) if not _is_static_zero(p)]
    n_seq, n_img = len(seq_parts), len(img_parts)

    B, H = ques_w.shape
    out_dtype = ques_w.dtype

    # Lane-dense hidden dim (multiple of 128); padded lanes are zero and stay zero.
    Hp = H if H % 128 == 0 else ((H + 127) // 128) * 128

    # Row tile: as large as fits under a conservative VMEM budget (v7x-safe under
    # the 32 MiB default scoped limit), double-buffered inputs + output.
    itemsize = jnp.dtype(out_dtype).itemsize
    vmem_budget = 24 << 20
    per_row = (n_seq + n_img + 1) * 2 * Hp * itemsize
    max_rows = max(8, vmem_budget // max(per_row, 1))
    TB = min(block_rows, B, max_rows)
    if TB != B:
        TB = max(8, (TB // 8) * 8)
    Bp = pl.cdiv(B, TB) * TB

    def prep(a):
        a = _pad_lanes(a, Hp)
        if Bp != B:
            a = jnp.pad(a, ((0, Bp - B), (0, 0)))
        return a

    data_in = [prep(a) for a in seq_parts + img_parts]
    param_in = [_pad_lanes(params[k], Hp) for k in
                ("ln_seq_w", "ln_seq_b", "ln_img_w", "ln_img_b", "gate_w")]
    # gate bias cancels in the 2-way softmax -> not passed to the kernel

    data_spec = pl.BlockSpec((TB, Hp), lambda i: (i, 0))
    param_spec = pl.BlockSpec((1, Hp), lambda i: (0, 0))

    out = pl.pallas_call(
        _make_kernel(n_seq, n_img, H, out_dtype),
        out_shape=jax.ShapeDtypeStruct((Bp, Hp), out_dtype),
        grid_spec=pltpu.PrefetchScalarGridSpec(
            num_scalar_prefetch=0,
            grid=(Bp // TB,),
            in_specs=[data_spec] * (n_seq + n_img) + [param_spec] * 5,
            out_specs=data_spec,
        ),
        compiler_params=pltpu.CompilerParams(
            dimension_semantics=("parallel",)),
    )(*data_in, *param_in)

    return out[:B, :H]


# ----------------------------- params / reference -----------------------------


def make_params(hidden_size, key):
    """Deterministic synthetic parameters with the shapes from __init__."""
    k = jax.random.split(key, 6)
    return {
        # nn.LayerNorm(hidden_size): weight [H], bias [H]  (stored as [1, H] rows)
        "ln_seq_w": 1.0 + 0.05 * jax.random.normal(k[0], (1, hidden_size), jnp.float32),
        "ln_seq_b": 0.05 * jax.random.normal(k[1], (1, hidden_size), jnp.float32),
        "ln_img_w": 1.0 + 0.05 * jax.random.normal(k[2], (1, hidden_size), jnp.float32),
        "ln_img_b": 0.05 * jax.random.normal(k[3], (1, hidden_size), jnp.float32),
        # nn.Linear(hidden_size, 1): weight [1, H], bias [1] (stored as [1, 1])
        "gate_w": jax.random.normal(k[4], (1, hidden_size), jnp.float32) * (hidden_size ** -0.5),
        "gate_b": jax.random.normal(k[5], (1, 1), jnp.float32) * 0.1,
        # TODO(synk): filtration_gate (Linear(2H,H)+ReLU) exists in __init__ but is unused in forward.
    }


def _layernorm_ref(x, w, b):
    mu = jnp.mean(x, axis=-1, keepdims=True)
    var = jnp.mean((x - mu) ** 2, axis=-1, keepdims=True)
    return (x - mu) * jax.lax.rsqrt(var + LN_EPS) * w + b


def gated_fusion_ref(seq_in, img_in, params):
    """Pure-JAX reference mirroring the PyTorch forward (incl. bias + 2-way softmax)."""
    seq_att = _layernorm_ref(seq_in, params["ln_seq_w"], params["ln_seq_b"])
    img_att = _layernorm_ref(img_in, params["ln_img_w"], params["ln_img_b"])
    ls = seq_att @ params["gate_w"].T + params["gate_b"][0, 0]    # [B, 1]
    li = img_att @ params["gate_w"].T + params["gate_b"][0, 0]    # [B, 1]
    gate0 = jax.nn.softmax(jnp.stack([ls, li], axis=0), axis=0)[0]  # [B, 1]
    return (seq_att - img_att) * gate0 + img_att


# ----------------------------- demo -------------------------------------------


if __name__ == "__main__":
    B, H = 8, 32  # batch, hidden_size (small demo shapes)
    key = jax.random.PRNGKey(0)
    k_q, k_i, k_qp, k_p = jax.random.split(key, 4)

    ques_w = jax.random.normal(k_q, (B, H), jnp.float32)
    img_w = jax.random.normal(k_i, (B, H), jnp.float32)
    ques_p = 0.1 * jax.random.normal(k_qp, (B, H), jnp.float32)  # exercises the fused in-kernel add
    params = make_params(H, k_p)

    out = gated_fusion(ques_w, img_w, params, ques_p=ques_p)
    jax.block_until_ready(out)

    ref = gated_fusion_ref(ques_w + ques_p, img_w, params)
    assert out.shape == (B, H)
    err = float(jnp.max(jnp.abs(out - ref)))
    assert err < 1e-4, f"mismatch vs reference: {err}"

    print("KERNEL_OK")
</pallas_src>

<mosaic_0001>
module attributes {stable_mosaic.version = 11 : i64} {
  func.func @kernel(%arg0: i32, %arg1: memref<8x128xf32, #tpu.memory_space<vmem>>, %arg2: memref<8x128xf32, #tpu.memory_space<vmem>>, %arg3: memref<8x128xf32, #tpu.memory_space<vmem>>, %arg4: memref<1x128xf32, #tpu.memory_space<vmem>>, %arg5: memref<1x128xf32, #tpu.memory_space<vmem>>, %arg6: memref<1x128xf32, #tpu.memory_space<vmem>>, %arg7: memref<1x128xf32, #tpu.memory_space<vmem>>, %arg8: memref<1x128xf32, #tpu.memory_space<vmem>>, %arg9: memref<8x128xf32, #tpu.memory_space<vmem>>) attributes {dimension_semantics = [#tpu.dimension_semantics<parallel>], iteration_bounds = array<i64: 1>, scalar_prefetch = 0 : i64, scratch_operands = 0 : i64, tpu.core_type = #tpu.core_type<tc>, window_params = [{transform_indices = @transform_0, window_bounds = array<i64: 8, 128>}, {transform_indices = @transform_1, window_bounds = array<i64: 8, 128>}, {transform_indices = @transform_2, window_bounds = array<i64: 8, 128>}, {pipeline_mode = #tpu.pipeline_mode<synchronous>, transform_indices = @transform_3, window_bounds = array<i64: 1, 128>}, {pipeline_mode = #tpu.pipeline_mode<synchronous>, transform_indices = @transform_4, window_bounds = array<i64: 1, 128>}, {pipeline_mode = #tpu.pipeline_mode<synchronous>, transform_indices = @transform_5, window_bounds = array<i64: 1, 128>}, {pipeline_mode = #tpu.pipeline_mode<synchronous>, transform_indices = @transform_6, window_bounds = array<i64: 1, 128>}, {pipeline_mode = #tpu.pipeline_mode<synchronous>, transform_indices = @transform_7, window_bounds = array<i64: 1, 128>}, {transform_indices = @transform_8, window_bounds = array<i64: 8, 128>}]} {
    %c0 = arith.constant 0 : index
    %c0_0 = arith.constant 0 : index
    %0 = vector.load %arg1[%c0, %c0_0] : memref<8x128xf32, #tpu.memory_space<vmem>>, vector<8x128xf32>
    %c0_1 = arith.constant 0 : index
    %c0_2 = arith.constant 0 : index
    %1 = vector.load %arg2[%c0_1, %c0_2] : memref<8x128xf32, #tpu.memory_space<vmem>>, vector<8x128xf32>
    %2 = arith.addf %0, %1 : vector<8x128xf32>
    %c0_3 = arith.constant 0 : index
    %c0_4 = arith.constant 0 : index
    %3 = vector.load %arg3[%c0_3, %c0_4] : memref<8x128xf32, #tpu.memory_space<vmem>>, vector<8x128xf32>
    %c0_5 = arith.constant 0 : index
    %c0_6 = arith.constant 0 : index
    %4 = vector.load %arg4[%c0_5, %c0_6] : memref<1x128xf32, #tpu.memory_space<vmem>>, vector<1x128xf32>
    %c0_7 = arith.constant 0 : index
    %c0_8 = arith.constant 0 : index
    %5 = vector.load %arg5[%c0_7, %c0_8] : memref<1x128xf32, #tpu.memory_space<vmem>>, vector<1x128xf32>
    %cst = arith.constant dense<0.000000e+00> : vector<8xf32>
    %6 = vector.multi_reduction <add>, %2, %cst [1] : vector<8x128xf32> to vector<8xf32>
    %7 = vector.shape_cast %6 : vector<8xf32> to vector<8x1xf32>
    %8 = arith.mulf %2, %2 : vector<8x128xf32>
    %cst_9 = arith.constant dense<0.000000e+00> : vector<8xf32>
    %9 = vector.multi_reduction <add>, %8, %cst_9 [1] : vector<8x128xf32> to vector<8xf32>
    %10 = vector.shape_cast %9 : vector<8xf32> to vector<8x1xf32>
    %cst_10 = arith.constant 3.125000e-02 : f32
    %11 = vector.broadcast %cst_10 : f32 to vector<8x1xf32>
    %12 = arith.mulf %7, %11 : vector<8x1xf32>
    %cst_11 = arith.constant 3.125000e-02 : f32
    %13 = vector.broadcast %cst_11 : f32 to vector<8x1xf32>
    %14 = arith.mulf %10, %13 : vector<8x1xf32>
    %15 = arith.mulf %12, %12 : vector<8x1xf32>
    %16 = arith.subf %14, %15 : vector<8x1xf32>
    %cst_12 = arith.constant 9.99999974E-6 : f32
    %17 = vector.broadcast %cst_12 : f32 to vector<8x1xf32>
    %18 = arith.addf %16, %17 : vector<8x1xf32>
    %19 = math.rsqrt %18 : vector<8x1xf32>
    %20 = vector.broadcast %12 : vector<8x1xf32> to vector<8x128xf32>
    %21 = arith.subf %2, %20 : vector<8x128xf32>
    %22 = vector.broadcast %19 : vector<8x1xf32> to vector<8x128xf32>
    %23 = arith.mulf %21, %22 : vector<8x128xf32>
    %24 = vector.broadcast %4 : vector<1x128xf32> to vector<8x128xf32>
    %25 = arith.mulf %23, %24 : vector<8x128xf32>
    %26 = vector.broadcast %5 : vector<1x128xf32> to vector<8x128xf32>
    %27 = arith.addf %25, %26 : vector<8x128xf32>
    %c0_13 = arith.constant 0 : index
    %c0_14 = arith.constant 0 : index
    %28 = vector.load %arg6[%c0_13, %c0_14] : memref<1x128xf32, #tpu.memory_space<vmem>>, vector<1x128xf32>
    %c0_15 = arith.constant 0 : index
    %c0_16 = arith.constant 0 : index
    %29 = vector.load %arg7[%c0_15, %c0_16] : memref<1x128xf32, #tpu.memory_space<vmem>>, vector<1x128xf32>
    %cst_17 = arith.constant dense<0.000000e+00> : vector<8xf32>
    %30 = vector.multi_reduction <add>, %3, %cst_17 [1] : vector<8x128xf32> to vector<8xf32>
    %31 = vector.shape_cast %30 : vector<8xf32> to vector<8x1xf32>
    %32 = arith.mulf %3, %3 : vector<8x128xf32>
    %cst_18 = arith.constant dense<0.000000e+00> : vector<8xf32>
    %33 = vector.multi_reduction <add>, %32, %cst_18 [1] : vector<8x128xf32> to vector<8xf32>
    %34 = vector.shape_cast %33 : vector<8xf32> to vector<8x1xf32>
    %cst_19 = arith.constant 3.125000e-02 : f32
    %35 = vector.broadcast %cst_19 : f32 to vector<8x1xf32>
    %36 = arith.mulf %31, %35 : vector<8x1xf32>
    %cst_20 = arith.constant 3.125000e-02 : f32
    %37 = vector.broadcast %cst_20 : f32 to vector<8x1xf32>
    %38 = arith.mulf %34, %37 : vector<8x1xf32>
    %39 = arith.mulf %36, %36 : vector<8x1xf32>
    %40 = arith.subf %38, %39 : vector<8x1xf32>
    %cst_21 = arith.constant 9.99999974E-6 : f32
    %41 = vector.broadcast %cst_21 : f32 to vector<8x1xf32>
    %42 = arith.addf %40, %41 : vector<8x1xf32>
    %43 = math.rsqrt %42 : vector<8x1xf32>
    %44 = vector.broadcast %36 : vector<8x1xf32> to vector<8x128xf32>
    %45 = arith.subf %3, %44 : vector<8x128xf32>
    %46 = vector.broadcast %43 : vector<8x1xf32> to vector<8x128xf32>
    %47 = arith.mulf %45, %46 : vector<8x128xf32>
    %48 = vector.broadcast %28 : vector<1x128xf32> to vector<8x128xf32>
    %49 = arith.mulf %47, %48 : vector<8x128xf32>
    %50 = vector.broadcast %29 : vector<1x128xf32> to vector<8x128xf32>
    %51 = arith.addf %49, %50 : vector<8x128xf32>
    %52 = arith.subf %27, %51 : vector<8x128xf32>
    %c0_22 = arith.constant 0 : index
    %c0_23 = arith.constant 0 : index
    %53 = vector.load %arg8[%c0_22, %c0_23] : memref<1x128xf32, #tpu.memory_space<vmem>>, vector<1x128xf32>
    %54 = vector.broadcast %53 : vector<1x128xf32> to vector<8x128xf32>
    %55 = arith.mulf %52, %54 : vector<8x128xf32>
    %cst_24 = arith.constant dense<0.000000e+00> : vector<8xf32>
    %56 = vector.multi_reduction <add>, %55, %cst_24 [1] : vector<8x128xf32> to vector<8xf32>
    %57 = vector.shape_cast %56 : vector<8xf32> to vector<8x1xf32>
    %58 = arith.negf %57 : vector<8x1xf32>
    %59 = math.exp %58 : vector<8x1xf32>
    %cst_25 = arith.constant 1.000000e+00 : f32
    %60 = vector.broadcast %cst_25 : f32 to vector<8x1xf32>
    %61 = arith.addf %60, %59 : vector<8x1xf32>
    %62 = arith.divf %60, %61 : vector<8x1xf32>
    %63 = vector.broadcast %62 : vector<8x1xf32> to vector<8x128xf32>
    %64 = arith.mulf %52, %63 : vector<8x128xf32>
    %65 = arith.addf %64, %51 : vector<8x128xf32>
    %c0_26 = arith.constant 0 : index
    %c0_27 = arith.constant 0 : index
    %66 = vector.load %arg9[%c0_26, %c0_27] : memref<8x128xf32, #tpu.memory_space<vmem>>, vector<8x128xf32>
    tpu.vector_store %arg9[%c0_26, %c0_27], %65 {strides = array<i32>} : memref<8x128xf32, #tpu.memory_space<vmem>>, vector<8x128xf32>,
    return
  }
  func.func @transform_0(%arg0: i32) -> (i32, i32) {
    %c0_i32 = arith.constant 0 : i32
    %c0_i32_0 = arith.constant 0 : i32
    return %arg0, %c0_i32 : i32, i32
  }
  func.func @transform_1(%arg0: i32) -> (i32, i32) {
    %c0_i32 = arith.constant 0 : i32
    %c0_i32_0 = arith.constant 0 : i32
    return %arg0, %c0_i32 : i32, i32
  }
  func.func @transform_2(%arg0: i32) -> (i32, i32) {
    %c0_i32 = arith.constant 0 : i32
    %c0_i32_0 = arith.constant 0 : i32
    return %arg0, %c0_i32 : i32, i32
  }
  func.func @transform_3(%arg0: i32) -> (i32, i32) {
    %c0_i32 = arith.constant 0 : i32
    %c0_i32_0 = arith.constant 0 : i32
    %c0_i32_1 = arith.constant 0 : i32
    return %c0_i32, %c0_i32_0 : i32, i32
  }
  func.func @transform_4(%arg0: i32) -> (i32, i32) {
    %c0_i32 = arith.constant 0 : i32
    %c0_i32_0 = arith.constant 0 : i32
    %c0_i32_1 = arith.constant 0 : i32
    return %c0_i32, %c0_i32_0 : i32, i32
  }
  func.func @transform_5(%arg0: i32) -> (i32, i32) {
    %c0_i32 = arith.constant 0 : i32
    %c0_i32_0 = arith.constant 0 : i32
    %c0_i32_1 = arith.constant 0 : i32
    return %c0_i32, %c0_i32_0 : i32, i32
  }
  func.func @transform_6(%arg0: i32) -> (i32, i32) {
    %c0_i32 = arith.constant 0 : i32
    %c0_i32_0 = arith.constant 0 : i32
    %c0_i32_1 = arith.constant 0 : i32
    return %c0_i32, %c0_i32_0 : i32, i32
  }
  func.func @transform_7(%arg0: i32) -> (i32, i32) {
    %c0_i32 = arith.constant 0 : i32
    %c0_i32_0 = arith.constant 0 : i32
    %c0_i32_1 = arith.constant 0 : i32
    return %c0_i32, %c0_i32_0 : i32, i32
  }
  func.func @transform_8(%arg0: i32) -> (i32, i32) {
    %c0_i32 = arith.constant 0 : i32
    %c0_i32_0 = arith.constant 0 : i32
    return %arg0, %c0_i32 : i32, i32
  }
}

</mosaic_0001>

<llo_original>
// kernel: tpu_custom_call.1
$region0: #{tpu_custom_call.1}
  #allocation0 [shape = 'u32[]', space=smem, size = 0x4, offset = 0x4, fixed_abs, tag = 'smem constant byte address 0x4 - core index']
  #allocation1 [shape = 'u32[72,128]{1,0:T(1,128)}', space=vmem, size = 0x9000, scoped, tag = 'internal scratch']
  %s0 = inlined_call_operand.hbm [shape: f32[8,128], index: 0, kind: input, shape index: {}]
  %s1 = inlined_call_operand.hbm [shape: f32[8,128], index: 1, kind: input, shape index: {}]
  %s2 = inlined_call_operand.hbm [shape: f32[8,128], index: 2, kind: input, shape index: {}]
  %s3 = inlined_call_operand.vmem [shape: f32[1,128], index: 3, kind: input, shape index: {}]
  %s4 = inlined_call_operand.vmem [shape: f32[1,128], index: 4, kind: input, shape index: {}]
  %s5 = inlined_call_operand.vmem [shape: f32[1,128], index: 5, kind: input, shape index: {}]
  %s6 = inlined_call_operand.vmem [shape: f32[1,128], index: 6, kind: input, shape index: {}]
  %s7 = inlined_call_operand.vmem [shape: f32[1,128], index: 7, kind: input, shape index: {}]
  %s8 = inlined_call_operand.hbm [shape: f32[8,128], index: 8, kind: output, shape index: {}]
  %s9 = sld [smem:[#allocation0]]
  $region54: #{tpu_custom_call.1} parent=0
    _
  %s11 = ssub.s32 1, %s9
  %s12 = scalar_select 0, %s11, %s9
  $region1: #{tpu_custom_call.1} parent=0
    #allocation2 [shape = 'u8[4096]{0}', space=vmem, size = 0x1000, scoped, tag = 'input window, operand 0, single buffered']
    #allocation3 [shape = 's32[1]{0}', space=sflag, size = 0x4, scoped, tag = 'scoped memory for tpu_custom_call.1']
    #allocation4 [shape = 's32[1]{0}', space=sflag, size = 0x4, scoped, tag = 'scoped memory for tpu_custom_call.1']
    #allocation5 [shape = 'u8[4096]{0}', space=vmem, size = 0x1000, scoped, tag = 'input window, operand 1, single buffered']
    #allocation6 [shape = 's32[1]{0}', space=sflag, size = 0x4, scoped, tag = 'scoped memory for tpu_custom_call.1']
    #allocation7 [shape = 'u8[4096]{0}', space=vmem, size = 0x1000, scoped, tag = 'input window, operand 2, single buffered']
    #allocation8 [shape = 'u8[4096]{0}', space=vmem, size = 0x1000, scoped, tag = 'output window, operand 0, single buffered']
    %13 = vsyncpa [#allocation3], 0
    %14 = vsyncpa [#allocation6], 0
    %15 = vsyncpa [#allocation4], 0
    // Predicated region
    $region2: #{tpu_custom_call.1} parent=1 // pred_check
      _
    $region3: #{tpu_custom_call.1} parent=1 // pred_check_branch
      %17 = sbr.rel (0) target = $region5
    $region4: #{tpu_custom_call.1} parent=1 // pred_region
      %19 = vsyncadd [#allocation3], 0
      %s21 = sshll.u32 %s0, 4
      %s22 = int_to_ptr.hbm [resolvable:$true] %s21
      %s23 = sshll.u32 [#allocation2], 4
      %s24 = int_to_ptr.vmem [resolvable:$true] %s23
      %26 = dma.hbm_to_vmem [thread:$0]  %s22, 128, %s24, [#allocation3]
    $region5: #{tpu_custom_call.1} parent=1 // pred_fallthru
      _
    // Predicated region
    $region6: #{tpu_custom_call.1} parent=1 // pred_check
      _
    $region7: #{tpu_custom_call.1} parent=1 // pred_check_branch
      %28 = sbr.rel (0) target = $region9
    $region8: #{tpu_custom_call.1} parent=1 // pred_region
      %30 = vsyncadd [#allocation6], 0
      %s32 = sshll.u32 %s1, 4
      %s33 = int_to_ptr.hbm [resolvable:$true] %s32
      %s34 = sshll.u32 [#allocation5], 4
      %s35 = int_to_ptr.vmem [resolvable:$true] %s34
      %37 = dma.hbm_to_vmem [thread:$0]  %s33, 128, %s35, [#allocation6]
    $region9: #{tpu_custom_call.1} parent=1 // pred_fallthru
      _
    // Predicated region
    $region10: #{tpu_custom_call.1} parent=1 // pred_check
      _
    $region11: #{tpu_custom_call.1} parent=1 // pred_check_branch
      %39 = sbr.rel (0) target = $region13
    $region12: #{tpu_custom_call.1} parent=1 // pred_region
      %41 = vsyncadd [#allocation6], 0
      %s43 = sshll.u32 %s2, 4
      %s44 = int_to_ptr.hbm [resolvable:$true] %s43
      %s45 = sshll.u32 [#allocation7], 4
      %s46 = int_to_ptr.vmem [resolvable:$true] %s45
      %48 = dma.hbm_to_vmem [thread:$0]  %s44, 128, %s46, [#allocation6]
    $region13: #{tpu_custom_call.1} parent=1 // pred_fallthru
      _
    // Predicated region
    $region14: #{tpu_custom_call.1} parent=1 // pred_check
      _
    $region15: #{tpu_custom_call.1} parent=1 // pred_check_branch
      %50 = sbr.rel (0) target = $region17
    $region16: #{tpu_custom_call.1} parent=1 // pred_region
      _
    $region17: #{tpu_custom_call.1} parent=1 // pred_fallthru
      _
    // Predicated region
    $region18: #{tpu_custom_call.1} parent=1 // pred_check
      _
    $region19: #{tpu_custom_call.1} parent=1 // pred_check_branch
      %52 = sbr.rel (0) target = $region21
    $region20: #{tpu_custom_call.1} parent=1 // pred_region
      _
    $region21: #{tpu_custom_call.1} parent=1 // pred_fallthru
      _
    // Predicated region
    $region22: #{tpu_custom_call.1} parent=1 // pred_check
      _
    $region23: #{tpu_custom_call.1} parent=1 // pred_check_branch
      %54 = sbr.rel (0) target = $region25
    $region24: #{tpu_custom_call.1} parent=1 // pred_region
      _
    $region25: #{tpu_custom_call.1} parent=1 // pred_fallthru
      _
    // Predicated region
    $region26: #{tpu_custom_call.1} parent=1 // pred_check
      _
    $region27: #{tpu_custom_call.1} parent=1 // pred_check_branch
      %56 = sbr.rel (0) target = $region29
    $region28: #{tpu_custom_call.1} parent=1 // pred_region
      _
    $region29: #{tpu_custom_call.1} parent=1 // pred_fallthru
      _
    // Predicated region
    $region30: #{tpu_custom_call.1} parent=1 // pred_check
      _
    $region31: #{tpu_custom_call.1} parent=1 // pred_check_branch
      %58 = sbr.rel (0) target = $region33
    $region32: #{tpu_custom_call.1} parent=1 // pred_region
      _
    $region33: #{tpu_custom_call.1} parent=1 // pred_fallthru
      _
    // Predicated region
    $region34: #{tpu_custom_call.1} parent=1 // pred_check
      _
    $region35: #{tpu_custom_call.1} parent=1 // pred_check_branch
      %60 = sbr.rel (0) target = $region37
    $region36: #{tpu_custom_call.1} parent=1 // pred_region
      %62 = dma.done [#allocation3], 128
    $region37: #{tpu_custom_call.1} parent=1 // pred_fallthru
      _
    // Predicated region
    $region38: #{tpu_custom_call.1} parent=1 // pred_check
      _
    $region39: #{tpu_custom_call.1} parent=1 // pred_check_branch
      %64 = sbr.rel (0) target = $region41
    $region40: #{tpu_custom_call.1} parent=1 // pred_region
      %66 = dma.done [#allocation6], 128
    $region41: #{tpu_custom_call.1} parent=1 // pred_fallthru
      _
    // Predicated region
    $region42: #{tpu_custom_call.1} parent=1 // pred_check
      _
    $region43: #{tpu_custom_call.1} parent=1 // pred_check_branch
      %68 = sbr.rel (0) target = $region45
    $region44: #{tpu_custom_call.1} parent=1 // pred_region
      %70 = dma.done [#allocation6], 128
    $region45: #{tpu_custom_call.1} parent=1 // pred_fallthru
      _
    %v71 = vld [vmem:[#allocation2] sm:$0xff]
    %v72 = vld [vmem:[#allocation5] sm:$0xff]
    %v73 = vadd.f32 %v71, %v72
    %v74 = vld [vmem:[#allocation7] sm:$0xff]
    %v75 = vld [vmem:[%s3] sm:$0x1]
    %v76 = vld [vmem:[%s4] sm:$0x1]
    %77 = vadd.xlane.f32.xlu0 %v73
    %v78 = vpop.xlane.xlu0 %77
    %v79 = vmul.f32 %v73, %v73
    %80 = vadd.xlane.f32.xlu0 %v79
    %v81 = vpop.xlane.xlu0 %80
    %v82 = vmul.f32 %v78, 0.03125
    %v83 = vmul.f32 %v81, 0.03125
    %v84 = vmul.f32 %v82, %v82
    %v85 = vsub.f32 %v83, %v84
    %v86 = vadd.f32 %v85, 1e-05
    %v87 = vrsqrt.pop %v86
    %v88 = vmul.f32 %v87, %v86
    %v89 = vmul.f32 %v88, %v87
    %v90 = vmul.f32 0.5, %v89
    %v91 = vsub.f32 1.5, %v90
    %v92 = vmul.f32 %v87, %v91
    %vm93 = vweird.f32 %v86
    %vm94 = vweird.f32 %v87
    %vm95 = vmor %vm93, %vm94
    %v96 = vsel %vm95, %v87, %v92
    %v97 = vsub.f32 %v73, %v82
    %v98 = vmul.f32 %v97, %v96
    %v100 = vperm.slane %v75, 0
    %v102 = vmul.f32 %v98, %v100
    %v104 = vperm.slane %v76, 0
    %v106 = vadd.f32 %v102, %v104
    %v107 = vld [vmem:[%s5] sm:$0x1]
    %v108 = vld [vmem:[%s6] sm:$0x1]
    %109 = vadd.xlane.f32.xlu0 %v74
    %v110 = vpop.xlane.xlu0 %109
    %v111 = vmul.f32 %v74, %v74
    %112 = vadd.xlane.f32.xlu0 %v111
    %v113 = vpop.xlane.xlu0 %112
    %v114 = vmul.f32 %v110, 0.03125
    %v115 = vmul.f32 %v113, 0.03125
    %v116 = vmul.f32 %v114, %v114
    %v117 = vsub.f32 %v115, %v116
    %v118 = vadd.f32 %v117, 1e-05
    %v119 = vrsqrt.pop %v118
    %v120 = vmul.f32 %v119, %v118
    %v121 = vmul.f32 %v120, %v119
    %v122 = vmul.f32 0.5, %v121
    %v123 = vsub.f32 1.5, %v122
    %v124 = vmul.f32 %v119, %v123
    %vm125 = vweird.f32 %v118
    %vm126 = vweird.f32 %v119
    %vm127 = vmor %vm125, %vm126
    %v128 = vsel %vm127, %v119, %v124
    %v129 = vsub.f32 %v74, %v114
    %v130 = vmul.f32 %v129, %v128
    %v132 = vperm.slane %v107, 0
    %v134 = vmul.f32 %v130, %v132
    %v136 = vperm.slane %v108, 0
    %v138 = vadd.f32 %v134, %v136
    %v139 = vsub.f32 %v106, %v138
    %v140 = vld [vmem:[%s7] sm:$0x1]
    %v142 = vperm.slane %v140, 0
    %v144 = vmul.f32 %v139, %v142
    %145 = vadd.xlane.f32.xlu0 %v144
    %v146 = vpop.xlane.xlu0 %145
    %v147 = vxor.u32 %v146, 2147483648
    %v148 = vmul.f32 %v147, 1.442695
    %v149 = vpow.pop %v148
    %v150 = vadd.f32 %v149, 1.0
    %v151 = vrcp.pop %v150
    %v152 = vmul.f32 %v150, %v151
    %v153 = vsub.f32 1.0, %v152
    %v154 = vmul.f32 %v151, %v153
    %v155 = vadd.f32 %v151, %v154
    %vm156 = vweird.f32 %v150
    %vm157 = vweird.f32 %v151
    %vm158 = vmor %vm156, %vm157
    %v159 = vsel %vm158, %v151, %v155
    %v160 = vand.u32 2147483647, %v150
    %vm161 = vcmp.eq.f32.partialorder %v160, 8.507059e+37
    %v162 = vand.u32 %v150, 2147483648
    %v163 = vor.u32 1.1754944e-38, %v162
    %v164 = vsel %vm161, %v163, %v159
    %v165 = vmul.f32 1.0, %v164
    %v166 = vmul.f32 %v139, %v165
    %v167 = vadd.f32 %v166, %v138
    %168 = vst [vmem:[#allocation8] sm:$0xff] %v167
    // Predicated region
    $region46: #{tpu_custom_call.1} parent=1 // pred_check
      _
    $region47: #{tpu_custom_call.1} parent=1 // pred_check_branch
      %170 = sbr.rel (0) target = $region49
    $region48: #{tpu_custom_call.1} parent=1 // pred_region
      %172 = vsyncadd [#allocation4], 0
      %s174 = sshll.u32 [#allocation8], 4
      %s175 = int_to_ptr.vmem [resolvable:$true] %s174
      %s176 = sshll.u32 %s8, 4
      %s177 = int_to_ptr.hbm [resolvable:$true] %s176
      %179 = dma.vmem_to_hbm [thread:$0]  %s175, 128, %s177, [#allocation4]
    $region49: #{tpu_custom_call.1} parent=1 // pred_fallthru
      _
    // Predicated region
    $region50: #{tpu_custom_call.1} parent=1 // pred_check
      _
    $region51: #{tpu_custom_call.1} parent=1 // pred_check_branch
      %181 = sbr.rel (0) target = $region53
    $region52: #{tpu_custom_call.1} parent=1 // pred_region
      %183 = dma.done [#allocation4], 128
    $region53: #{tpu_custom_call.1} parent=1 // pred_fallthru
      _
    %184 = vsyncpa [#allocation3], 1
    %185 = vsyncpa [#allocation6], 1
    %186 = vsyncpa [#allocation4], 1

</llo_original>
